<compile_context>
chip_gen: v5e
topology: v5e:2x2
jax: 0.10.0
libtpu: 0.0.40
codegen_flags: <defaults>
</compile_context>

<pallas_src>
import math
import functools

import jax
import jax.numpy as jnp
from jax import lax
from jax.experimental import pallas as pl
from jax.experimental.pallas import tpu as pltpu


_SQRT_2 = math.sqrt(2.0)
_SQRT_2_OVER_PI = math.sqrt(2.0 / math.pi)


def _apply_act(h, act):
    """Activation (VPU/EUP). `act` is a static Python string."""
    if act == "gelu":          # exact erf form -- matches the torch module
        return h * 0.5 * (1.0 + lax.erf(h / _SQRT_2))
    if act == "gelu_tanh":     # EUP-friendly approximation (opt-in, e.g. v5e)
        return 0.5 * h * (1.0 + jnp.tanh(_SQRT_2_OVER_PI *
                                         (h + 0.044715 * h * h * h)))
    if act == "relu":
        return jnp.maximum(h, 0.0)
    if act == "swish":
        return h * jax.nn.sigmoid(h)
    if act == "tanh":
        return jnp.tanh(h)
    if act == "sigmoid":
        return jax.nn.sigmoid(h)
    raise ValueError(f"unsupported activation: {act}")


def feedforward_kernel(x_ref, w1_ref, b1_ref, w2_ref, b2_ref, g_ref, beta_ref,
                       o_ref, *, eps, act, inv_h, matmul_dtype, act_dtype):
    x = x_ref[...]                                   # (tm, Hp), input dtype

    # dense_1: MXU pass in matmul_dtype (bf16 by default) with f32 accumulate.
    h = jnp.dot(x.astype(matmul_dtype), w1_ref[...],
                preferred_element_type=jnp.float32)  # (tm, Ip) f32
    h = h + b1_ref[...].astype(jnp.float32)

    # Activation. Padded inner columns feed zero rows of W2, so whatever the
    # activation produces there never reaches the output.
    h = _apply_act(h.astype(act_dtype), act)

    # dense_2
    y = jnp.dot(h.astype(matmul_dtype), w2_ref[...],
                preferred_element_type=jnp.float32)  # (tm, Hp) f32
    y = y + b2_ref[...].astype(jnp.float32)

    # dropout (identity in eval) + residual with the original-precision x.
    z = y + x.astype(jnp.float32)

    # LayerNorm over the REAL hidden size. Padded lanes of z are exactly zero
    # (zero-padded x, W2 columns, b2), so full-lane sums equal real-H sums.
    # Sum-based stats: two independent XLU reductions.
    # (Note: E[z^2]-E[z]^2 can cancel if z has a huge mean; fine post-residual.)
    s = jnp.sum(z, axis=-1, keepdims=True)
    sq = jnp.sum(z * z, axis=-1, keepdims=True)
    mean = s * inv_h
    var = sq * inv_h - mean * mean
    z_hat = (z - mean) * lax.rsqrt(var + eps)
    out = z_hat * g_ref[...].astype(jnp.float32) + beta_ref[...].astype(jnp.float32)

    o_ref[...] = out.astype(o_ref.dtype)             # lane-dense full-width store


def _round_up(n, m):
    return ((n + m - 1) // m) * m


def _vmem_cap_bytes():
    """Generation-aware scoped-VMEM cap (3/4 of physical per-TC VMEM):
    ~96 MiB on v5e/v6e, ~48 MiB on v7x (64 MiB/TC, weights duplicated per TC
    under the 'parallel' row axis)."""
    try:
        info = pltpu.get_tpu_info()
        phys = int(getattr(info, "vmem_capacity_bytes"))
        if phys > 0:
            return (phys * 3) // 4
    except Exception:
        pass
    return 48 << 20  # conservative default that fits every generation


def _vmem_bytes_estimate(tm, Hp, Ip, x_bytes, w_bytes, p_bytes):
    """Footprint: double-buffered x/out row tiles + resident W1/W2 (single
    buffer) + small vectors + f32 intermediates, with headroom for compiler
    internal scratch."""
    io_tiles = 2 * tm * Hp * x_bytes + 2 * tm * Hp * x_bytes   # x in, out (2-deep)
    weights = 2 * Hp * Ip * w_bytes                            # W1 + W2 resident
    vectors = (Ip + 3 * Hp) * p_bytes                          # b1, b2, gamma, beta
    activ = tm * Ip * 4 + 2 * tm * Hp * 4                      # h, z/z_hat (f32)
    return int(1.3 * (io_tiles + weights + vectors + activ)) + (4 << 20)


def _build_call(*, N, Hp, Ip, tm, out_dtype, eps, act, inv_h, matmul_dtype,
                act_dtype, single_buffer_weights, vmem_limit_bytes):
    if single_buffer_weights:
        # Constant-index operands: one buffer is enough (fetched once).
        def const_spec(shape):
            return pl.BlockSpec(shape, lambda i: (0, 0),
                                pipeline_mode=pl.Buffered(1))
    else:
        def const_spec(shape):
            return pl.BlockSpec(shape, lambda i: (0, 0))

    kernel = functools.partial(feedforward_kernel, eps=eps, act=act,
                               inv_h=inv_h, matmul_dtype=matmul_dtype,
                               act_dtype=act_dtype)
    grid_m = pl.cdiv(N, tm)   # ragged last block handled by Pallas masking
    return pl.pallas_call(
        kernel,
        out_shape=jax.ShapeDtypeStruct((N, Hp), out_dtype),
        grid_spec=pltpu.PrefetchScalarGridSpec(
            num_scalar_prefetch=0,
            grid=(grid_m,),
            in_specs=[
                pl.BlockSpec((tm, Hp), lambda i: (i, 0)),   # x rows (2-deep)
                const_spec((Hp, Ip)),                       # W1 (resident)
                const_spec((1, Ip)),                        # b1
                const_spec((Ip, Hp)),                       # W2 (resident)
                const_spec((1, Hp)),                        # b2
                const_spec((1, Hp)),                        # LN gamma
                const_spec((1, Hp)),                        # LN beta
            ],
            out_specs=pl.BlockSpec((tm, Hp), lambda i: (i, 0)),
        ),
        compiler_params=pltpu.CompilerParams(
            dimension_semantics=("parallel",),   # rows split across TCs (megacore)
            vmem_limit_bytes=vmem_limit_bytes,
        ),
    )


def feedforward(x, w1, b1, w2, b2, gamma, beta, *, eps=1e-12, act="gelu",
                tm=512, matmul_dtype=jnp.bfloat16, act_dtype=None,
                pad_lanes=True, vmem_limit_bytes=None):
    """RecBole-GNN FeedForward forward: x [B, S, H] -> [B, S, H]."""
    B, S, H = x.shape
    I = w1.shape[1]
    N = B * S
    in_dtype = x.dtype
    if act_dtype is None:
        act_dtype = jnp.float32   # keep elementwise math f32 (safe on v5e)

    # ---- lane-dense feature dims (no-op when H, I are multiples of 128) ----
    Hp = _round_up(H, 128) if pad_lanes else H
    Ip = _round_up(I, 128) if pad_lanes else I
    w1p, b1p, w2p, b2p, gp, bp = w1, b1, w2, b2, gamma, beta
    if Hp != H or Ip != I:
        w1p = jnp.pad(w1, ((0, Hp - H), (0, Ip - I)))
        w2p = jnp.pad(w2, ((0, Ip - I), (0, Hp - H)))
        b1p = jnp.pad(b1, ((0, 0), (0, Ip - I)))
        b2p = jnp.pad(b2, ((0, 0), (0, Hp - H)))
        gp = jnp.pad(gamma, ((0, 0), (0, Hp - H)))
        bp = jnp.pad(beta, ((0, 0), (0, Hp - H)))
    # bf16 MXU operands (biases / LN params stay in their original precision).
    w1p = w1p.astype(matmul_dtype)
    w2p = w2p.astype(matmul_dtype)

    x2 = x.reshape(N, H)
    if Hp != H:
        x2 = jnp.pad(x2, ((0, 0), (0, Hp - H)))   # only for non-128-multiple H

    # ---- row tile: multiple of 8, large by default, fit the VMEM budget ----
    tm_eff = min(tm, _round_up(N, 8))
    if pl.cdiv(N, tm_eff) < 2 and N > 8:
        tm_eff = _round_up(pl.cdiv(N, 2), 8)      # >= 2 steps for dual-TC chips

    cap = _vmem_cap_bytes()
    x_bytes = jnp.dtype(in_dtype).itemsize
    w_bytes = jnp.dtype(matmul_dtype).itemsize
    p_bytes = jnp.dtype(b1.dtype).itemsize
    while tm_eff > 8 and _vmem_bytes_estimate(tm_eff, Hp, Ip,
                                              x_bytes, w_bytes, p_bytes) > cap:
        tm_eff = max(8, _round_up(tm_eff // 2, 8))

    grid_m = pl.cdiv(N, tm_eff)
    if grid_m > 1 and grid_m % 2 == 1:
        # Even step count -> clean shard across v7x's 2 TensorCores.
        tm_try = max(8, _round_up(pl.cdiv(N, grid_m + 1), 8))
        if pl.cdiv(N, tm_try) % 2 == 0:
            tm_eff = tm_try
            grid_m = pl.cdiv(N, tm_eff)

    if vmem_limit_bytes is None:
        est = _vmem_bytes_estimate(tm_eff, Hp, Ip, x_bytes, w_bytes, p_bytes)
        vmem_limit_bytes = min(max(32 << 20, est), cap)

    call_kwargs = dict(N=N, Hp=Hp, Ip=Ip, tm=tm_eff, out_dtype=in_dtype,
                       eps=eps, act=act, inv_h=1.0 / H,
                       matmul_dtype=matmul_dtype, act_dtype=act_dtype,
                       vmem_limit_bytes=vmem_limit_bytes)
    args = (x2, w1p, b1p, w2p, b2p, gp, bp)
    try:
        out = _build_call(single_buffer_weights=True, **call_kwargs)(*args)
    except (TypeError, ValueError, NotImplementedError, pltpu.LoweringException):
        # Only Buffered(1)-related rejections fall back (identical numerics,
        # weights just stay double-buffered). Real compile errors propagate.
        out = _build_call(single_buffer_weights=False, **call_kwargs)(*args)

    if Hp != H:
        out = out[:, :H]
    return out.reshape(B, S, H)


def reference(x, w1, b1, w2, b2, gamma, beta, eps=1e-12):
    h = x @ w1 + b1
    h = h * 0.5 * (1.0 + lax.erf(h / _SQRT_2))
    y = h @ w2 + b2
    z = y + x
    mean = jnp.mean(z, axis=-1, keepdims=True)
    var = jnp.mean((z - mean) ** 2, axis=-1, keepdims=True)
    return (z - mean) / jnp.sqrt(var + eps) * gamma + beta


if __name__ == "__main__":
    # Module hyperparameters (synthetic, deterministic init).
    hidden_size = 32
    inner_size = 64
    layer_norm_eps = 1e-12
    hidden_act = "gelu"
    batch, seq = 2, 8

    key = jax.random.PRNGKey(0)
    kx, k1, kb1, k2, kb2 = jax.random.split(key, 5)

    x = jax.random.normal(kx, (batch, seq, hidden_size), dtype=jnp.float32)

    # nn.Linear-like init (uniform in +-1/sqrt(fan_in)), stored as [in, out].
    lim1 = 1.0 / math.sqrt(hidden_size)
    w1 = jax.random.uniform(k1, (hidden_size, inner_size), jnp.float32, -lim1, lim1)
    b1 = jax.random.uniform(kb1, (1, inner_size), jnp.float32, -lim1, lim1)
    lim2 = 1.0 / math.sqrt(inner_size)
    w2 = jax.random.uniform(k2, (inner_size, hidden_size), jnp.float32, -lim2, lim2)
    b2 = jax.random.uniform(kb2, (1, hidden_size), jnp.float32, -lim2, lim2)

    gamma = jnp.ones((1, hidden_size), jnp.float32)
    beta = jnp.zeros((1, hidden_size), jnp.float32)

    ref = reference(x.reshape(-1, hidden_size), w1, b1, w2, b2, gamma, beta,
                    eps=layer_norm_eps).reshape(batch, seq, hidden_size)

    # Exact-semantics path (f32 MXU operands): tight tolerance vs reference.
    out_f32 = feedforward(x, w1, b1, w2, b2, gamma, beta,
                          eps=layer_norm_eps, act=hidden_act,
                          matmul_dtype=jnp.float32)
    out_f32 = jax.block_until_ready(out_f32)
    assert out_f32.shape == ref.shape
    assert jnp.allclose(out_f32, ref, atol=1e-5, rtol=1e-5), "f32 path mismatch"

    # Default fast path (bf16 MXU operands, f32 accumulation): looser tolerance.
    out_bf16 = feedforward(x, w1, b1, w2, b2, gamma, beta,
                           eps=layer_norm_eps, act=hidden_act)
    out_bf16 = jax.block_until_ready(out_bf16)
    assert out_bf16.shape == ref.shape
    assert jnp.allclose(out_bf16, ref, atol=1e-1, rtol=1e-1), "bf16 path mismatch"

    print("KERNEL_OK")
</pallas_src>

<mosaic_0001>
module attributes {stable_mosaic.version = 11 : i64} {
  func.func @feedforward_kernel(%arg0: i32, %arg1: memref<8x128xf32, #tpu.memory_space<vmem>>, %arg2: memref<128x128xf32, #tpu.memory_space<vmem>>, %arg3: memref<1x128xf32, #tpu.memory_space<vmem>>, %arg4: memref<128x128xf32, #tpu.memory_space<vmem>>, %arg5: memref<1x128xf32, #tpu.memory_space<vmem>>, %arg6: memref<1x128xf32, #tpu.memory_space<vmem>>, %arg7: memref<1x128xf32, #tpu.memory_space<vmem>>, %arg8: memref<8x128xf32, #tpu.memory_space<vmem>>) attributes {dimension_semantics = [#tpu.dimension_semantics<parallel>], iteration_bounds = array<i64: 2>, scalar_prefetch = 0 : i64, scratch_operands = 0 : i64, tpu.core_type = #tpu.core_type<tc>, window_params = [{transform_indices = @transform_0, window_bounds = array<i64: 8, 128>}, {pipeline_mode = #tpu.pipeline_mode<synchronous>, transform_indices = @transform_1, window_bounds = array<i64: 128, 128>}, {pipeline_mode = #tpu.pipeline_mode<synchronous>, transform_indices = @transform_2, window_bounds = array<i64: 1, 128>}, {pipeline_mode = #tpu.pipeline_mode<synchronous>, transform_indices = @transform_3, window_bounds = array<i64: 128, 128>}, {pipeline_mode = #tpu.pipeline_mode<synchronous>, transform_indices = @transform_4, window_bounds = array<i64: 1, 128>}, {pipeline_mode = #tpu.pipeline_mode<synchronous>, transform_indices = @transform_5, window_bounds = array<i64: 1, 128>}, {pipeline_mode = #tpu.pipeline_mode<synchronous>, transform_indices = @transform_6, window_bounds = array<i64: 1, 128>}, {transform_indices = @transform_7, window_bounds = array<i64: 8, 128>}]} {
    %c0 = arith.constant 0 : index
    %c0_0 = arith.constant 0 : index
    %0 = vector.load %arg1[%c0, %c0_0] : memref<8x128xf32, #tpu.memory_space<vmem>>, vector<8x128xf32>
    %c0_1 = arith.constant 0 : index
    %c0_2 = arith.constant 0 : index
    %1 = vector.load %arg2[%c0_1, %c0_2] : memref<128x128xf32, #tpu.memory_space<vmem>>, vector<128x128xf32>
    %cst = arith.constant dense<0.000000e+00> : vector<8x128xf32>
    %2 = tpu.matmul %0, %1, %cst {dimension_numbers = #tpu.dot_dimension_numbers<[1], [0], [0], [1], [0, 0, 1, 1], [], []>} : vector<8x128xf32>, vector<128x128xf32>, vector<8x128xf32> -> vector<8x128xf32>
    %c0_3 = arith.constant 0 : index
    %c0_4 = arith.constant 0 : index
    %3 = vector.load %arg3[%c0_3, %c0_4] : memref<1x128xf32, #tpu.memory_space<vmem>>, vector<1x128xf32>
    %4 = vector.broadcast %3 : vector<1x128xf32> to vector<8x128xf32>
    %5 = arith.addf %2, %4 : vector<8x128xf32>
    %cst_5 = arith.constant 5.000000e-01 : f32
    %6 = vector.broadcast %cst_5 : f32 to vector<8x128xf32>
    %7 = arith.mulf %5, %6 : vector<8x128xf32>
    %cst_6 = arith.constant 1.41421354 : f32
    %8 = vector.broadcast %cst_6 : f32 to vector<8x128xf32>
    %9 = arith.divf %5, %8 : vector<8x128xf32>
    %10 = math.erf %9 : vector<8x128xf32>
    %cst_7 = arith.constant 1.000000e+00 : f32
    %11 = vector.broadcast %cst_7 : f32 to vector<8x128xf32>
    %12 = arith.addf %11, %10 : vector<8x128xf32>
    %13 = arith.mulf %7, %12 : vector<8x128xf32>
    %c0_8 = arith.constant 0 : index
    %c0_9 = arith.constant 0 : index
    %14 = vector.load %arg4[%c0_8, %c0_9] : memref<128x128xf32, #tpu.memory_space<vmem>>, vector<128x128xf32>
    %cst_10 = arith.constant dense<0.000000e+00> : vector<8x128xf32>
    %15 = tpu.matmul %13, %14, %cst_10 {dimension_numbers = #tpu.dot_dimension_numbers<[1], [0], [0], [1], [0, 0, 1, 1], [], []>} : vector<8x128xf32>, vector<128x128xf32>, vector<8x128xf32> -> vector<8x128xf32>
    %c0_11 = arith.constant 0 : index
    %c0_12 = arith.constant 0 : index
    %16 = vector.load %arg5[%c0_11, %c0_12] : memref<1x128xf32, #tpu.memory_space<vmem>>, vector<1x128xf32>
    %17 = vector.broadcast %16 : vector<1x128xf32> to vector<8x128xf32>
    %18 = arith.addf %15, %17 : vector<8x128xf32>
    %19 = arith.addf %18, %0 : vector<8x128xf32>
    %cst_13 = arith.constant dense<0.000000e+00> : vector<8xf32>
    %20 = vector.multi_reduction <add>, %19, %cst_13 [1] : vector<8x128xf32> to vector<8xf32>
    %21 = vector.shape_cast %20 : vector<8xf32> to vector<8x1xf32>
    %22 = arith.mulf %19, %19 : vector<8x128xf32>
    %cst_14 = arith.constant dense<0.000000e+00> : vector<8xf32>
    %23 = vector.multi_reduction <add>, %22, %cst_14 [1] : vector<8x128xf32> to vector<8xf32>
    %24 = vector.shape_cast %23 : vector<8xf32> to vector<8x1xf32>
    %cst_15 = arith.constant 3.125000e-02 : f32
    %25 = vector.broadcast %cst_15 : f32 to vector<8x1xf32>
    %26 = arith.mulf %21, %25 : vector<8x1xf32>
    %cst_16 = arith.constant 3.125000e-02 : f32
    %27 = vector.broadcast %cst_16 : f32 to vector<8x1xf32>
    %28 = arith.mulf %24, %27 : vector<8x1xf32>
    %29 = arith.mulf %26, %26 : vector<8x1xf32>
    %30 = arith.subf %28, %29 : vector<8x1xf32>
    %31 = vector.broadcast %26 : vector<8x1xf32> to vector<8x128xf32>
    %32 = arith.subf %19, %31 : vector<8x128xf32>
    %cst_17 = arith.constant 9.99999996E-13 : f32
    %33 = vector.broadcast %cst_17 : f32 to vector<8x1xf32>
    %34 = arith.addf %30, %33 : vector<8x1xf32>
    %35 = math.rsqrt %34 : vector<8x1xf32>
    %36 = vector.broadcast %35 : vector<8x1xf32> to vector<8x128xf32>
    %37 = arith.mulf %32, %36 : vector<8x128xf32>
    %c0_18 = arith.constant 0 : index
    %c0_19 = arith.constant 0 : index
    %38 = vector.load %arg6[%c0_18, %c0_19] : memref<1x128xf32, #tpu.memory_space<vmem>>, vector<1x128xf32>
    %39 = vector.broadcast %38 : vector<1x128xf32> to vector<8x128xf32>
    %40 = arith.mulf %37, %39 : vector<8x128xf32>
    %c0_20 = arith.constant 0 : index
    %c0_21 = arith.constant 0 : index
    %41 = vector.load %arg7[%c0_20, %c0_21] : memref<1x128xf32, #tpu.memory_space<vmem>>, vector<1x128xf32>
    %42 = vector.broadcast %41 : vector<1x128xf32> to vector<8x128xf32>
    %43 = arith.addf %40, %42 : vector<8x128xf32>
    %c0_22 = arith.constant 0 : index
    %c0_23 = arith.constant 0 : index
    %44 = vector.load %arg8[%c0_22, %c0_23] : memref<8x128xf32, #tpu.memory_space<vmem>>, vector<8x128xf32>
    tpu.vector_store %arg8[%c0_22, %c0_23], %43 {strides = array<i32>} : memref<8x128xf32, #tpu.memory_space<vmem>>, vector<8x128xf32>,
    return
  }
  func.func @transform_0(%arg0: i32) -> (i32, i32) {
    %c0_i32 = arith.constant 0 : i32
    %c0_i32_0 = arith.constant 0 : i32
    return %arg0, %c0_i32 : i32, i32
  }
  func.func @transform_1(%arg0: i32) -> (i32, i32) {
    %c0_i32 = arith.constant 0 : i32
    %c0_i32_0 = arith.constant 0 : i32
    %c0_i32_1 = arith.constant 0 : i32
    return %c0_i32, %c0_i32_0 : i32, i32
  }
  func.func @transform_2(%arg0: i32) -> (i32, i32) {
    %c0_i32 = arith.constant 0 : i32
    %c0_i32_0 = arith.constant 0 : i32
    %c0_i32_1 = arith.constant 0 : i32
    return %c0_i32, %c0_i32_0 : i32, i32
  }
  func.func @transform_3(%arg0: i32) -> (i32, i32) {
    %c0_i32 = arith.constant 0 : i32
    %c0_i32_0 = arith.constant 0 : i32
    %c0_i32_1 = arith.constant 0 : i32
    return %c0_i32, %c0_i32_0 : i32, i32
  }
  func.func @transform_4(%arg0: i32) -> (i32, i32) {
    %c0_i32 = arith.constant 0 : i32
    %c0_i32_0 = arith.constant 0 : i32
    %c0_i32_1 = arith.constant 0 : i32
    return %c0_i32, %c0_i32_0 : i32, i32
  }
  func.func @transform_5(%arg0: i32) -> (i32, i32) {
    %c0_i32 = arith.constant 0 : i32
    %c0_i32_0 = arith.constant 0 : i32
    %c0_i32_1 = arith.constant 0 : i32
    return %c0_i32, %c0_i32_0 : i32, i32
  }
  func.func @transform_6(%arg0: i32) -> (i32, i32) {
    %c0_i32 = arith.constant 0 : i32
    %c0_i32_0 = arith.constant 0 : i32
    %c0_i32_1 = arith.constant 0 : i32
    return %c0_i32, %c0_i32_0 : i32, i32
  }
  func.func @transform_7(%arg0: i32) -> (i32, i32) {
    %c0_i32 = arith.constant 0 : i32
    %c0_i32_0 = arith.constant 0 : i32
    return %arg0, %c0_i32 : i32, i32
  }
}

</mosaic_0001>

<llo_original>
// kernel: tpu_custom_call.1
$region0: #{tpu_custom_call.1}
  #allocation0 [shape = 'u32[]', space=smem, size = 0x4, offset = 0x4, fixed_abs, tag = 'smem constant byte address 0x4 - core index']
  #allocation1 [shape = 'u32[72,128]{1,0:T(1,128)}', space=vmem, size = 0x9000, scoped, tag = 'internal scratch']
  %s0 = inlined_call_operand.hbm [shape: f32[16,128], index: 0, kind: input, shape index: {}]
  %s1 = inlined_call_operand.hbm [shape: f32[128,128], index: 1, kind: input, shape index: {}]
  %s2 = inlined_call_operand.vmem [shape: f32[1,128], index: 2, kind: input, shape index: {}]
  %s3 = inlined_call_operand.hbm [shape: f32[128,128], index: 3, kind: input, shape index: {}]
  %s4 = inlined_call_operand.vmem [shape: f32[1,128], index: 4, kind: input, shape index: {}]
  %s5 = inlined_call_operand.vmem [shape: f32[1,128], index: 5, kind: input, shape index: {}]
  %s6 = inlined_call_operand.vmem [shape: f32[1,128], index: 6, kind: input, shape index: {}]
  %s7 = inlined_call_operand.hbm [shape: f32[16,128], index: 7, kind: output, shape index: {}]
  %s8 = sld [smem:[#allocation0]]
  $region73: #{tpu_custom_call.1} parent=0
    _
  %s10 = ssub.s32 1, %s8
  %s11 = scalar_select 0, %s10, %s8
  $region1: #{tpu_custom_call.1} parent=0
    #allocation2 [shape = 'u8[8192]{0}', space=vmem, size = 0x2000, scoped, tag = 'input window, operand 0']
    #allocation3 [shape = 's32[2]{0}', space=sflag, size = 0x8, scoped, tag = 'scoped memory for tpu_custom_call.1']
    #allocation4 [shape = 's32[2]{0}', space=sflag, size = 0x8, scoped, tag = 'scoped memory for tpu_custom_call.1']
    #allocation5 [shape = 'u8[65536]{0}', space=vmem, size = 0x10000, scoped, tag = 'input window, operand 1, single buffered']
    #allocation6 [shape = 's32[1]{0}', space=sflag, size = 0x4, scoped, tag = 'scoped memory for tpu_custom_call.1']
    #allocation7 [shape = 'u8[65536]{0}', space=vmem, size = 0x10000, scoped, tag = 'input window, operand 3, single buffered']
    #allocation8 [shape = 'u8[8192]{0}', space=vmem, size = 0x2000, scoped, tag = 'output window, operand 0']
    %12 = vsyncpa [#allocation3], 0
    %s13 = scalar_lea.sflag [#allocation3], 1
    %14 = vsyncpa %s13, 0
    %15 = vsyncpa [#allocation6], 0
    %16 = vsyncpa [#allocation4], 0
    %s17 = scalar_lea.sflag [#allocation4], 1
    %18 = vsyncpa %s17, 0
    loop: start=0, step=1, limit=4
    $region2: #{tpu_custom_call.1} parent=1 // loop_pre_header
      _
    $region3: #{tpu_custom_call.1} parent=1 // loop_header
      %s20 = sphi 0, %s24
      %p21 = scmp.ge.s32.totalorder %s20, 4
      %s30 = sphi 0, %s32
      %s33 = sphi 0, %s30
      %s34 = sphi 0, %s33
      %s50 = sphi 0, %s34
      %s54 = sphi 0, %s54
      %s56 = sphi 0, %s54
      %s57 = sphi 0, %s56
      %s71 = sphi 0, %s57
      %s75 = sphi 0, %s75
      %s77 = sphi 0, %s75
      %s78 = sphi 0, %s77
      %s92 = sphi 0, %s78
      %s96 = sphi 0, %s96
      %s98 = sphi 0, %s96
      %s99 = sphi 0, %s98
      %s113 = sphi 0, %s99
      %s117 = sphi 0, %s117
      %s119 = sphi 0, %s117
      %s120 = sphi 0, %s119
      %s134 = sphi 0, %s120
      %s138 = sphi 0, %s138
      %s140 = sphi 0, %s138
      %s141 = sphi 0, %s140
      %s155 = sphi 0, %s141
      %s159 = sphi 0, %s159
      %s161 = sphi 0, %s159
      %s162 = sphi 0, %s161
      %s176 = sphi 0, %s162
      %s182 = sphi 0, %s184
      %s185 = sphi 0, %s182
      %s186 = sphi 0, %s185
      %s202 = sphi 0, %s186
    $region4: #{tpu_custom_call.1} parent=1 // loop_header_branch
      %23 = sbr.rel (%p21) target = $region8
    $region5: #{tpu_custom_call.1} parent=1 // loop_body
      %s25 = ssub.s32 %s20, 1
      %s26 = ssub.s32 %s20, 2
      %s27 = sadd.s32 %s20, 1
      %s28 = ssub.s32 %s20, %s27
      %p29 = scmp.eq.s32.totalorder %s28, 0
      %s31 = sadd.s32 %s30, 1
      %s32 = scalar_select %p29, %s30, %s31
      %p35 = pneg %p29
      %p36 = scmp.eq.s32.totalorder %s20, 1
      %p37 = por %p35, %p36
      %p38 = scmp.ne.s32.totalorder %s30, %s33
      %p39 = scmp.eq.s32.totalorder %s20, 0
      %p40 = por %p38, %p39
      %p41 = scmp.ne.s32.totalorder %s30, %s33
      %p42 = scmp.eq.s32.totalorder %s25, 1
      %p43 = por %p41, %p42
      %p44 = scmp.ne.s32.totalorder %s33, %s34
      %p45 = scmp.eq.s32.totalorder %s25, 0
      %p46 = por %p44, %p45
      %p47 = scmp.ne.s32.totalorder %s33, %s34
      %p48 = scmp.eq.s32.totalorder %s26, 1
      %p49 = por %p47, %p48
      %p51 = scmp.ne.s32.totalorder %s34, %s50
      %p52 = scmp.eq.s32.totalorder %s26, 0
      %p53 = por %p51, %p52
      %s55 = sadd.s32 %s54, 1
      %p58 = scmp.eq.s32.totalorder %s20, 1
      %p59 = scmp.ne.s32.totalorder %s54, %s56
      %p60 = scmp.eq.s32.totalorder %s20, 0
      %p61 = por %p59, %p60
      %p62 = scmp.ne.s32.totalorder %s54, %s56
      %p63 = scmp.eq.s32.totalorder %s25, 1
      %p64 = por %p62, %p63
      %p65 = scmp.ne.s32.totalorder %s56, %s57
      %p66 = scmp.eq.s32.totalorder %s25, 0
      %p67 = por %p65, %p66
      %p68 = scmp.ne.s32.totalorder %s56, %s57
      %p69 = scmp.eq.s32.totalorder %s26, 1
      %p70 = por %p68, %p69
      %p72 = scmp.ne.s32.totalorder %s57, %s71
      %p73 = scmp.eq.s32.totalorder %s26, 0
      %p74 = por %p72, %p73
      %s76 = sadd.s32 %s75, 1
      %p79 = scmp.eq.s32.totalorder %s20, 1
      %p80 = scmp.ne.s32.totalorder %s75, %s77
      %p81 = scmp.eq.s32.totalorder %s20, 0
      %p82 = por %p80, %p81
      %p83 = scmp.ne.s32.totalorder %s75, %s77
      %p84 = scmp.eq.s32.totalorder %s25, 1
      %p85 = por %p83, %p84
      %p86 = scmp.ne.s32.totalorder %s77, %s78
      %p87 = scmp.eq.s32.totalorder %s25, 0
      %p88 = por %p86, %p87
      %p89 = scmp.ne.s32.totalorder %s77, %s78
      %p90 = scmp.eq.s32.totalorder %s26, 1
      %p91 = por %p89, %p90
      %p93 = scmp.ne.s32.totalorder %s78, %s92
      %p94 = scmp.eq.s32.totalorder %s26, 0
      %p95 = por %p93, %p94
      %s97 = sadd.s32 %s96, 1
      %p100 = scmp.eq.s32.totalorder %s20, 1
      %p101 = scmp.ne.s32.totalorder %s96, %s98
      %p102 = scmp.eq.s32.totalorder %s20, 0
      %p103 = por %p101, %p102
      %p104 = scmp.ne.s32.totalorder %s96, %s98
      %p105 = scmp.eq.s32.totalorder %s25, 1
      %p106 = por %p104, %p105
      %p107 = scmp.ne.s32.totalorder %s98, %s99
      %p108 = scmp.eq.s32.totalorder %s25, 0
      %p109 = por %p107, %p108
      %p110 = scmp.ne.s32.totalorder %s98, %s99
      %p111 = scmp.eq.s32.totalorder %s26, 1
      %p112 = por %p110, %p111
      %p114 = scmp.ne.s32.totalorder %s99, %s113
      %p115 = scmp.eq.s32.totalorder %s26, 0
      %p116 = por %p114, %p115
      %s118 = sadd.s32 %s117, 1
      %p121 = scmp.eq.s32.totalorder %s20, 1
      %p122 = scmp.ne.s32.totalorder %s117, %s119
      %p123 = scmp.eq.s32.totalorder %s20, 0
      %p124 = por %p122, %p123
      %p125 = scmp.ne.s32.totalorder %s117, %s119
      %p126 = scmp.eq.s32.totalorder %s25, 1
      %p127 = por %p125, %p126
      %p128 = scmp.ne.s32.totalorder %s119, %s120
      %p129 = scmp.eq.s32.totalorder %s25, 0
      %p130 = por %p128, %p129
      %p131 = scmp.ne.s32.totalorder %s119, %s120
      %p132 = scmp.eq.s32.totalorder %s26, 1
      %p133 = por %p131, %p132
      %p135 = scmp.ne.s32.totalorder %s120, %s134
      %p136 = scmp.eq.s32.totalorder %s26, 0
      %p137 = por %p135, %p136
      %s139 = sadd.s32 %s138, 1
      %p142 = scmp.eq.s32.totalorder %s20, 1
      %p143 = scmp.ne.s32.totalorder %s138, %s140
      %p144 = scmp.eq.s32.totalorder %s20, 0
      %p145 = por %p143, %p144
      %p146 = scmp.ne.s32.totalorder %s138, %s140
      %p147 = scmp.eq.s32.totalorder %s25, 1
      %p148 = por %p146, %p147
      %p149 = scmp.ne.s32.totalorder %s140, %s141
      %p150 = scmp.eq.s32.totalorder %s25, 0
      %p151 = por %p149, %p150
      %p152 = scmp.ne.s32.totalorder %s140, %s141
      %p153 = scmp.eq.s32.totalorder %s26, 1
      %p154 = por %p152, %p153
      %p156 = scmp.ne.s32.totalorder %s141, %s155
      %p157 = scmp.eq.s32.totalorder %s26, 0
      %p158 = por %p156, %p157
      %s160 = sadd.s32 %s159, 1
      %p163 = scmp.eq.s32.totalorder %s20, 1
      %p164 = scmp.ne.s32.totalorder %s159, %s161
      %p165 = scmp.eq.s32.totalorder %s20, 0
      %p166 = por %p164, %p165
      %p167 = scmp.ne.s32.totalorder %s159, %s161
      %p168 = scmp.eq.s32.totalorder %s25, 1
      %p169 = por %p167, %p168
      %p170 = scmp.ne.s32.totalorder %s161, %s162
      %p171 = scmp.eq.s32.totalorder %s25, 0
      %p172 = por %p170, %p171
      %p173 = scmp.ne.s32.totalorder %s161, %s162
      %p174 = scmp.eq.s32.totalorder %s26, 1
      %p175 = por %p173, %p174
      %p177 = scmp.ne.s32.totalorder %s162, %s176
      %p178 = scmp.eq.s32.totalorder %s26, 0
      %p179 = por %p177, %p178
      %s180 = ssub.s32 %s20, %s27
      %p181 = scmp.eq.s32.totalorder %s180, 0
      %s183 = sadd.s32 %s182, 1
      %s184 = scalar_select %p181, %s182, %s183
      %p187 = pneg %p181
      %p188 = scmp.eq.s32.totalorder %s20, 1
      %p189 = por %p187, %p188
      %p190 = scmp.ne.s32.totalorder %s182, %s185
      %p191 = scmp.eq.s32.totalorder %s20, 0
      %p192 = por %p190, %p191
      %p193 = scmp.ne.s32.totalorder %s182, %s185
      %p194 = scmp.eq.s32.totalorder %s25, 1
      %p195 = por %p193, %p194
      %p196 = scmp.ne.s32.totalorder %s185, %s186
      %p197 = scmp.eq.s32.totalorder %s25, 0
      %p198 = por %p196, %p197
      %p199 = scmp.ne.s32.totalorder %s185, %s186
      %p200 = scmp.eq.s32.totalorder %s26, 1
      %p201 = por %p199, %p200
      %p203 = scmp.ne.s32.totalorder %s186, %s202
      %p204 = scmp.eq.s32.totalorder %s26, 0
      %p205 = por %p203, %p204
      %p206 = scmp.le.s32.totalorder 1, %s20
      %p207 = scmp.lt.s32.totalorder %s20, 3
      %p208 = pnand %p206, %p207
      %p209 = pneg %p208
      // Predicated region
      $region9: #{tpu_custom_call.1} parent=5 // pred_check
        _
      $region10: #{tpu_custom_call.1} parent=5 // pred_check_branch
        %211 = sbr.rel (%p208) target = $region12
      $region11: #{tpu_custom_call.1} parent=5 // pred_region
        %s212 = ssub.s32 %s20, 1
        // Predicated region
        $region13: #{tpu_custom_call.1} parent=11 // pred_check
          %p213 = pneg %p67
        $region14: #{tpu_custom_call.1} parent=11 // pred_check_branch
          %215 = sbr.rel (%p213) target = $region16
        $region15: #{tpu_custom_call.1} parent=11 // pred_region
          %217 = vsyncadd [#allocation6], 0
          %s218 = sshll.u32 %s1, 4
          %s219 = int_to_ptr.hbm [resolvable:$true] %s218
          %s220 = sshll.u32 [#allocation5], 4
          %s221 = int_to_ptr.vmem [resolvable:$true] %s220
          %226 = dma.hbm_to_vmem [thread:$0]  %s219, 2048, %s221, [#allocation6], 128, 128, 8
        $region16: #{tpu_custom_call.1} parent=11 // pred_fallthru
          _
        // Predicated region
        $region17: #{tpu_custom_call.1} parent=11 // pred_check
          %p227 = pneg %p88
        $region18: #{tpu_custom_call.1} parent=11 // pred_check_branch
          %229 = sbr.rel (%p227) target = $region20
        $region19: #{tpu_custom_call.1} parent=11 // pred_region
          _
        $region20: #{tpu_custom_call.1} parent=11 // pred_fallthru
          _
        // Predicated region
        $region21: #{tpu_custom_call.1} parent=11 // pred_check
          %p230 = pneg %p109
        $region22: #{tpu_custom_call.1} parent=11 // pred_check_branch
          %232 = sbr.rel (%p230) target = $region24
        $region23: #{tpu_custom_call.1} parent=11 // pred_region
          %234 = vsyncadd [#allocation6], 0
          %s235 = sshll.u32 %s3, 4
          %s236 = int_to_ptr.hbm [resolvable:$true] %s235
          %s237 = sshll.u32 [#allocation7], 4
          %s238 = int_to_ptr.vmem [resolvable:$true] %s237
          %243 = dma.hbm_to_vmem [thread:$0]  %s236, 2048, %s238, [#allocation6], 128, 128, 8
        $region24: #{tpu_custom_call.1} parent=11 // pred_fallthru
          _
        // Predicated region
        $region25: #{tpu_custom_call.1} parent=11 // pred_check
          %p244 = pneg %p130
        $region26: #{tpu_custom_call.1} parent=11 // pred_check_branch
          %246 = sbr.rel (%p244) target = $region28
        $region27: #{tpu_custom_call.1} parent=11 // pred_region
          _
        $region28: #{tpu_custom_call.1} parent=11 // pred_fallthru
          _
        // Predicated region
        $region29: #{tpu_custom_call.1} parent=11 // pred_check
          %p247 = pneg %p151
        $region30: #{tpu_custom_call.1} parent=11 // pred_check_branch
          %249 = sbr.rel (%p247) target = $region32
        $region31: #{tpu_custom_call.1} parent=11 // pred_region
          _
        $region32: #{tpu_custom_call.1} parent=11 // pred_fallthru
          _
        // Predicated region
        $region33: #{tpu_custom_call.1} parent=11 // pred_check
          %p250 = pneg %p172
        $region34: #{tpu_custom_call.1} parent=11 // pred_check_branch
          %252 = sbr.rel (%p250) target = $region36
        $region35: #{tpu_custom_call.1} parent=11 // pred_region
          _
        $region36: #{tpu_custom_call.1} parent=11 // pred_fallthru
          _
      $region12: #{tpu_custom_call.1} parent=5 // pred_fallthru
        _
      %p253 = scmp.lt.s32.totalorder %s20, 2
      // Predicated region
      $region37: #{tpu_custom_call.1} parent=5 // pred_check
        %p254 = pneg %p253
      $region38: #{tpu_custom_call.1} parent=5 // pred_check_branch
        %256 = sbr.rel (%p254) target = $region40
      $region39: #{tpu_custom_call.1} parent=5 // pred_region
        // Predicated region
        $region41: #{tpu_custom_call.1} parent=39 // pred_check
          %p257 = pneg %p40
        $region42: #{tpu_custom_call.1} parent=39 // pred_check_branch
          %259 = sbr.rel (%p257) target = $region44
        $region43: #{tpu_custom_call.1} parent=39 // pred_region
          %s260 = sand.u32 %s30, 1
          %s261 = scalar_lea.sflag [#allocation3], %s260
          %s262 = sand.u32 %s30, 1
          %s263 = smul.addr %s262, 8
          %s264 = scalar_lea.vmem [#allocation2], %s263
          %266 = vsyncadd %s261, 0
          %s267 = smul.addr %s20, 8
          %s268 = scalar_lea.hbm %s0, %s267
          %s270 = sshll.u32 %s268, 4
          %s271 = int_to_ptr.hbm [resolvable:$true] %s270
          %s272 = sshll.u32 %s264, 4
          %s273 = int_to_ptr.vmem [resolvable:$true] %s272
          %275 = dma.hbm_to_vmem [thread:$0]  %s271, 128, %s273, %s261
        $region44: #{tpu_custom_call.1} parent=39 // pred_fallthru
          _
      $region40: #{tpu_custom_call.1} parent=5 // pred_fallthru
        _
      %p276 = scmp.le.s32.totalorder 1, %s20
      %p277 = scmp.lt.s32.totalorder %s20, 3
      %p278 = pnand %p276, %p277
      %p279 = pneg %p278
      // Predicated region
      $region45: #{tpu_custom_call.1} parent=5 // pred_check
        _
      $region46: #{tpu_custom_call.1} parent=5 // pred_check_branch
        %281 = sbr.rel (%p278) target = $region48
      $region47: #{tpu_custom_call.1} parent=5 // pred_region
        %s282 = ssub.s32 %s20, 1
        %s283 = sand.u32 %s33, 1
        %s284 = scalar_lea.sflag [#allocation3], %s283
        %s285 = sand.u32 %s33, 1
        %s286 = smul.addr %s285, 8
        %s287 = scalar_lea.vmem [#allocation2], %s286
        // Predicated region
        $region49: #{tpu_custom_call.1} parent=47 // pred_check
          %p288 = pneg %p46
        $region50: #{tpu_custom_call.1} parent=47 // pred_check_branch
          %290 = sbr.rel (%p288) target = $region52
        $region51: #{tpu_custom_call.1} parent=47 // pred_region
          %292 = dma.done %s284, 128
        $region52: #{tpu_custom_call.1} parent=47 // pred_fallthru
          _
        // Predicated region
        $region53: #{tpu_custom_call.1} parent=47 // pred_check
          %p293 = pneg %p67
        $region54: #{tpu_custom_call.1} parent=47 // pred_check_branch
          %295 = sbr.rel (%p293) target = $region56
        $region55: #{tpu_custom_call.1} parent=47 // pred_region
          %297 = dma.done [#allocation6], 2048
        $region56: #{tpu_custom_call.1} parent=47 // pred_fallthru
          _
        // Predicated region
        $region57: #{tpu_custom_call.1} parent=47 // pred_check
          %p298 = pneg %p109
        $region58: #{tpu_custom_call.1} parent=47 // pred_check_branch
          %300 = sbr.rel (%p298) target = $region60
        $region59: #{tpu_custom_call.1} parent=47 // pred_region
          %302 = dma.done [#allocation6], 2048
        $region60: #{tpu_custom_call.1} parent=47 // pred_fallthru
          _
        %s303 = sand.u32 %s33, 1
        %s304 = scalar_lea.sflag [#allocation3], %s303
        %s305 = sand.u32 %s33, 1
        %s306 = smul.addr %s305, 8
        %s307 = scalar_lea.vmem [#allocation2], %s306
        %p308 = pneg %p46
        %p309 = pneg %p43
        %p310 = pneg %p67
        %p311 = pneg %p64
        %p312 = pneg %p88
        %p313 = pneg %p85
        %p314 = pneg %p109
        %p315 = pneg %p106
        %p316 = pneg %p130
        %p317 = pneg %p127
        %p318 = pneg %p151
        %p319 = pneg %p148
        %p320 = pneg %p172
        %p321 = pneg %p169
        %p322 = pneg %p198
        %p323 = pneg %p195
        %s324 = sand.u32 %s185, 1
        %s325 = scalar_lea.sflag [#allocation4], %s324
        %s326 = sand.u32 %s185, 1
        %s327 = smul.addr %s326, 8
        %s328 = scalar_lea.vmem [#allocation8], %s327
        %v329 = vld [vmem:[%s287] sm:$0xff]
        %v330 = vld [vmem:[#allocation5] sm:$0xff]
        %v331 = vld [vmem:[#allocation5 + $0x8] sm:$0xff]
        %v332 = vld [vmem:[#allocation5 + $0x10] sm:$0xff]
        %v333 = vld [vmem:[#allocation5 + $0x18] sm:$0xff]
        %v334 = vld [vmem:[#allocation5 + $0x20] sm:$0xff]
        %v335 = vld [vmem:[#allocation5 + $0x28] sm:$0xff]
        %v336 = vld [vmem:[#allocation5 + $0x30] sm:$0xff]
        %v337 = vld [vmem:[#allocation5 + $0x38] sm:$0xff]
        %v338 = vld [vmem:[#allocation5 + $0x40] sm:$0xff]
        %v339 = vld [vmem:[#allocation5 + $0x48] sm:$0xff]
        %v340 = vld [vmem:[#allocation5 + $0x50] sm:$0xff]
        %v341 = vld [vmem:[#allocation5 + $0x58] sm:$0xff]
        %v342 = vld [vmem:[#allocation5 + $0x60] sm:$0xff]
        %v343 = vld [vmem:[#allocation5 + $0x68] sm:$0xff]
        %v344 = vld [vmem:[#allocation5 + $0x70] sm:$0xff]
        %v345 = vld [vmem:[#allocation5 + $0x78] sm:$0xff]
        %v346 = vld [vmem:[%s2] sm:$0x1]
        %v348 = vperm.slane %v346, 0
        %350 = vmatpush.msra.mxu0 %v345
        %351 = vmatpush.msra.mxu0 %v344
        %352 = vmatpush.msra.mxu0 %v343
        %353 = vmatpush.msra.mxu0 %v342
        %354 = vmatpush.msra.mxu0 %v341
        %355 = vmatpush.msra.mxu0 %v340
        %356 = vmatpush.msra.mxu0 %v339
        %357 = vmatpush.msra.mxu0 %v338
        %358 = vmatpush.msra.mxu0 %v337
        %359 = vmatpush.msra.mxu0 %v336
        %360 = vmatpush.msra.mxu0 %v335
        %361 = vmatpush.msra.mxu0 %v334
        %362 = vmatpush.msra.mxu0 %v333
        %363 = vmatpush.msra.mxu0 %v332
        %364 = vmatpush.msra.mxu0 %v331
        %365 = vmatpush.msra.mxu0 %v330
        %366 = vmatmul.f32.gmra.mxu0 %v329
        %v367 = vpop.f32.mrf.mxu0
        %v368 = vadd.f32 %v348, %v367
        %369 = vdwg.mxu0
        %v370 = vmul.f32 %v368, 0.5
        %v371 = vrcp.pop 1.4142135
        %v372 = vmul.f32 1.4142135, %v371
        %v373 = vsub.f32 1.0, %v372
        %v374 = vmul.f32 %v371, %v373
        %v375 = vadd.f32 %v371, %v374
        %vm376 = vweird.f32 %v371
        %v377 = vsel %vm376, %v371, %v375
        %v378 = vmul.f32 %v368, %v377
        %v379 = vmul.f32 %v378, %v378
        %v380 = vmin.f32 16.0, %v379
        %v381 = vmul.f32 %v380, 2.1237322e-06
        %v382 = vadd.f32 %v381, 0.00028619796
        %v383 = vmul.f32 %v380, %v382
        %v384 = vadd.f32 %v383, 0.0036580483
        %v385 = vmul.f32 %v380, %v384
        %v386 = vadd.f32 %v385, 0.05243302
        %v387 = vmul.f32 %v380, %v386
        %v388 = vadd.f32 %v387, 0.18741608
        %v389 = vmul.f32 %v380, %v388
        %v390 = vadd.f32 %v389, 1.1283791
        %v391 = vmul.f32 %v378, %v390
        %v392 = vmul.f32 %v380, 3.8918573e-05
        %v393 = vadd.f32 %v392, 0.001143296
        %v394 = vmul.f32 %v380, %v393
        %v395 = vadd.f32 %v394, 0.014752088
        %v396 = vmul.f32 %v380, %v395
        %v397 = vadd.f32 %v396, 0.112945676
        %v398 = vmul.f32 %v380, %v397
        %v399 = vadd.f32 %v398, 0.4994258
        %v400 = vmul.f32 %v380, %v399
        %v401 = vadd.f32 %v400, 1.0
        %v402 = vrcp.pop %v401
        %v403 = vmul.f32 %v401, %v402
        %v404 = vsub.f32 1.0, %v403
        %v405 = vmul.f32 %v402, %v404
        %v406 = vadd.f32 %v402, %v405
        %vm407 = vweird.f32 %v401
        %vm408 = vweird.f32 %v402
        %vm409 = vmor %vm407, %vm408
        %v410 = vsel %vm409, %v402, %v406
        %v411 = vand.u32 2147483647, %v401
        %vm412 = vcmp.eq.f32.partialorder %v411, 8.507059e+37
        %v413 = vand.u32 %v401, 2147483648
        %v414 = vor.u32 1.1754944e-38, %v413
        %v415 = vsel %vm412, %v414, %v410
        %v416 = vmul.f32 %v391, %v415
        %v417 = vmin.f32 %v416, 1.0
        %v418 = vmax.f32 %v417, -1.0
        %v419 = vadd.f32 %v418, 1.0
        %v420 = vmul.f32 %v370, %v419
        %v421 = vld [vmem:[#allocation7] sm:$0xff]
        %v422 = vld [vmem:[#allocation7 + $0x8] sm:$0xff]
        %v423 = vld [vmem:[#allocation7 + $0x10] sm:$0xff]
        %v424 = vld [vmem:[#allocation7 + $0x18] sm:$0xff]
        %v425 = vld [vmem:[#allocation7 + $0x20] sm:$0xff]
        %v426 = vld [vmem:[#allocation7 + $0x28] sm:$0xff]
        %v427 = vld [vmem:[#allocation7 + $0x30] sm:$0xff]
        %v428 = vld [vmem:[#allocation7 + $0x38] sm:$0xff]
        %v429 = vld [vmem:[#allocation7 + $0x40] sm:$0xff]
        %v430 = vld [vmem:[#allocation7 + $0x48] sm:$0xff]
        %v431 = vld [vmem:[#allocation7 + $0x50] sm:$0xff]
        %v432 = vld [vmem:[#allocation7 + $0x58] sm:$0xff]
        %v433 = vld [vmem:[#allocation7 + $0x60] sm:$0xff]
        %v434 = vld [vmem:[#allocation7 + $0x68] sm:$0xff]
        %v435 = vld [vmem:[#allocation7 + $0x70] sm:$0xff]
        %v436 = vld [vmem:[#allocation7 + $0x78] sm:$0xff]
        %v437 = vld [vmem:[%s4] sm:$0x1]
        %v439 = vperm.slane %v437, 0
        %441 = vmatpush.msra.mxu0 %v436
        %442 = vmatpush.msra.mxu0 %v435
        %443 = vmatpush.msra.mxu0 %v434
        %444 = vmatpush.msra.mxu0 %v433
        %445 = vmatpush.msra.mxu0 %v432
        %446 = vmatpush.msra.mxu0 %v431
        %447 = vmatpush.msra.mxu0 %v430
        %448 = vmatpush.msra.mxu0 %v429
        %449 = vmatpush.msra.mxu0 %v428
        %450 = vmatpush.msra.mxu0 %v427
        %451 = vmatpush.msra.mxu0 %v426
        %452 = vmatpush.msra.mxu0 %v425
        %453 = vmatpush.msra.mxu0 %v424
        %454 = vmatpush.msra.mxu0 %v423
        %455 = vmatpush.msra.mxu0 %v422
        %456 = vmatpush.msra.mxu0 %v421
        %457 = vmatmul.f32.gmra.mxu0 %v420
        %v458 = vpop.f32.mrf.mxu0
        %v459 = vadd.f32 %v439, %v458
        %460 = vdwg.mxu0
        %v461 = vadd.f32 %v459, %v329
        %462 = vadd.xlane.f32.xlu0 %v461
        %v463 = vpop.xlane.xlu0 %462
        %v464 = vmul.f32 %v461, %v461
        %465 = vadd.xlane.f32.xlu0 %v464
        %v466 = vpop.xlane.xlu0 %465
        %v467 = vmul.f32 %v463, 0.03125
        %v468 = vmul.f32 %v466, 0.03125
        %v469 = vmul.f32 %v467, %v467
        %v470 = vsub.f32 %v468, %v469
        %v471 = vsub.f32 %v461, %v467
        %v472 = vadd.f32 %v470, 1e-12
        %v473 = vrsqrt.pop %v472
        %v474 = vmul.f32 %v473, %v472
        %v475 = vmul.f32 %v474, %v473
        %v476 = vmul.f32 0.5, %v475
        %v477 = vsub.f32 1.5, %v476
        %v478 = vmul.f32 %v473, %v477
        %vm479 = vweird.f32 %v472
        %vm480 = vweird.f32 %v473
        %vm481 = vmor %vm479, %vm480
        %v482 = vsel %vm481, %v473, %v478
        %v483 = vmul.f32 %v471, %v482
        %v484 = vld [vmem:[%s5] sm:$0x1]
        %v486 = vperm.slane %v484, 0
        %v488 = vmul.f32 %v483, %v486
        %v489 = vld [vmem:[%s6] sm:$0x1]
        %v491 = vperm.slane %v489, 0
        %v493 = vadd.f32 %v488, %v491
        %494 = vst [vmem:[%s328] sm:$0xff] %v493
        %s495 = sand.u32 %s185, 1
        %s496 = scalar_lea.sflag [#allocation4], %s495
        %s497 = sand.u32 %s185, 1
        %s498 = smul.addr %s497, 8
        %s499 = scalar_lea.vmem [#allocation8], %s498
        // Predicated region
        $region61: #{tpu_custom_call.1} parent=47 // pred_check
          %p500 = pneg %p195
        $region62: #{tpu_custom_call.1} parent=47 // pred_check_branch
          %502 = sbr.rel (%p500) target = $region64
        $region63: #{tpu_custom_call.1} parent=47 // pred_region
          %504 = vsyncadd %s496, 0
          %s505 = smul.addr %s25, 8
          %s506 = scalar_lea.hbm %s7, %s505
          %s508 = sshll.u32 %s499, 4
          %s509 = int_to_ptr.vmem [resolvable:$true] %s508
          %s510 = sshll.u32 %s506, 4
          %s511 = int_to_ptr.hbm [resolvable:$true] %s510
          %513 = dma.vmem_to_hbm [thread:$0]  %s509, 128, %s511, %s496
        $region64: #{tpu_custom_call.1} parent=47 // pred_fallthru
          _
      $region48: #{tpu_custom_call.1} parent=5 // pred_fallthru
        _
      %p514 = scmp.le.s32.totalorder 2, %s20
      // Predicated region
      $region65: #{tpu_custom_call.1} parent=5 // pred_check
        %p515 = pneg %p514
      $region66: #{tpu_custom_call.1} parent=5 // pred_check_branch
        %517 = sbr.rel (%p515) target = $region68
      $region67: #{tpu_custom_call.1} parent=5 // pred_region
        %s518 = ssub.s32 %s20, 2
        // Predicated region
        $region69: #{tpu_custom_call.1} parent=67 // pred_check
          %p519 = pneg %p201
        $region70: #{tpu_custom_call.1} parent=67 // pred_check_branch
          %521 = sbr.rel (%p519) target = $region72
        $region71: #{tpu_custom_call.1} parent=67 // pred_region
          %s522 = sand.u32 %s186, 1
          %s523 = scalar_lea.sflag [#allocation4], %s522
          %s524 = sand.u32 %s186, 1
          %s525 = smul.addr %s524, 8
          %s526 = scalar_lea.vmem [#allocation8], %s525
          %528 = dma.done %s523, 128
        $region72: #{tpu_custom_call.1} parent=67 // pred_fallthru
          _
      $region68: #{tpu_custom_call.1} parent=5 // pred_fallthru
        _
    $region6: #{tpu_custom_call.1} parent=1 // loop_footer
      %s24 = sadd.s32 1, %s20
    $region7: #{tpu_custom_call.1} parent=1 // loop_footer_branch
      %19 = sbr.rel target = $region3
    $region8: #{tpu_custom_call.1} parent=1 // loop_exit
      _
    %529 = vsyncpa [#allocation3], 1
    %s530 = scalar_lea.sflag [#allocation3], 1
    %531 = vsyncpa %s530, 1
    %532 = vsyncpa [#allocation6], 1
    %533 = vsyncpa [#allocation4], 1
    %s534 = scalar_lea.sflag [#allocation4], 1
    %535 = vsyncpa %s534, 1

</llo_original>
